<compile_context>
chip_gen: v6e
topology: v6e:2x2x1
jax: 0.10.0
libtpu: 0.0.40
codegen_flags: <defaults>
</compile_context>

<pallas_src>
import functools

import jax
import jax.numpy as jnp
from jax import lax
from jax.experimental import pallas as pl
from jax.experimental.pallas import tpu as pltpu


def _round_up(x, m):
    return (x + m - 1) // m * m


def _linear1(f1_ref, f2_ref, w1_ref):
    """h = cat([f1, f2], 1) @ W1^T as a single K=2F MXU matmul (bf16 in, f32 acc)."""
    pair = jnp.concatenate([f1_ref[...], f2_ref[...]], axis=1)
    return jnp.dot(pair.astype(jnp.bfloat16), w1_ref[...],
                   preferred_element_type=jnp.float32)


def _bn_fold(sum_vec, sumsq_vec, nbf, bn_ref, eps):
    """Fold training-mode BatchNorm into a per-channel (scale, shift)."""
    mean = sum_vec / nbf
    var = sumsq_vec / nbf - mean * mean          # biased batch variance
    gamma = bn_ref[0:1, :]
    beta = bn_ref[1:2, :]
    scale = gamma * lax.rsqrt(var + eps)
    shift = beta - mean * scale
    return scale, shift


def _apply_head(h, scale, shift, w2_ref, b2_ref):
    """Folded BN + LeakyReLU(0.01) + Linear-2 (bf16 MXU, f32 acc)."""
    hn = h * scale + shift
    hn = jnp.where(hn >= 0.0, hn, 0.01 * hn)
    return jnp.dot(hn.astype(jnp.bfloat16), w2_ref[...],
                   preferred_element_type=jnp.float32) + b2_ref[...]


# --------------------------------------------------------------------------
# Path A: whole problem resident in VMEM -> one grid step, one fused kernel.
# --------------------------------------------------------------------------
def _single_step_kernel(nb_ref, f1_ref, f2_ref, w1_ref, bn_ref, w2_ref, b2_ref,
                        out_ref, *, eps):
    h = _linear1(f1_ref, f2_ref, w1_ref)
    nbf = nb_ref[0].astype(jnp.float32)
    s = jnp.sum(h, axis=0, keepdims=True)
    sq = jnp.sum(h * h, axis=0, keepdims=True)
    scale, shift = _bn_fold(s, sq, nbf, bn_ref, eps)
    out = _apply_head(h, scale, shift, w2_ref, b2_ref)
    out_ref[...] = out.astype(out_ref.dtype)


# --------------------------------------------------------------------------
# Path B: batch-tiled two-pass kernel (stats pass + output pass), with the
# Linear-1 activations cached in VMEM across the passes when they fit.
# --------------------------------------------------------------------------
def _two_pass_kernel(nb_ref, f1_ref, f2_ref, w1_ref, bn_ref, w2_ref, b2_ref,
                     out_ref, *scratch, tm, eps, cache_h):
    if cache_h:
        h_cache, sum_ref, sumsq_ref, scale_ref, shift_ref = scratch
    else:
        sum_ref, sumsq_ref, scale_ref, shift_ref = scratch

    p = pl.program_id(0)   # 0: stats pass, 1: output pass
    j = pl.program_id(1)   # batch-tile index

    @pl.when(p == 0)
    def _stats_pass():
        @pl.when(j == 0)
        def _init():
            sum_ref[...] = jnp.zeros_like(sum_ref)
            sumsq_ref[...] = jnp.zeros_like(sumsq_ref)

        h = _linear1(f1_ref, f2_ref, w1_ref)
        if cache_h:
            h_cache[j] = h                                   # reuse in pass 1

        # Ragged last tile: rows >= true batch size contribute nothing.
        row = lax.broadcasted_iota(jnp.int32, (tm, 1), 0) + j * tm
        valid = row < nb_ref[0]
        hm = jnp.where(valid, h, 0.0)
        sum_ref[...] += jnp.sum(hm, axis=0, keepdims=True)
        sumsq_ref[...] += jnp.sum(hm * hm, axis=0, keepdims=True)

    @pl.when(p == 1)
    def _output_pass():
        @pl.when(j == 0)
        def _fold_bn():
            nbf = nb_ref[0].astype(jnp.float32)
            scale, shift = _bn_fold(sum_ref[...], sumsq_ref[...], nbf, bn_ref, eps)
            scale_ref[...] = scale
            shift_ref[...] = shift

        if cache_h:
            h = h_cache[j]                                   # no recompute
        else:
            h = _linear1(f1_ref, f2_ref, w1_ref)

        out = _apply_head(h, scale_ref[...], shift_ref[...], w2_ref, b2_ref)
        out_ref[...] = out.astype(out_ref.dtype)
        # OOB rows of the ragged last tile are masked by the pipeline writeback.


def prepare_params(params):
    """One-time prep: pre-transpose + pre-cast weights, pack BN vectors."""
    F = params["w2"].shape[0]
    w1t = params["w1"].T.astype(jnp.bfloat16)                       # [2F, 2F]
    bn = jnp.stack([params["gamma"], params["beta"]], 0).astype(jnp.float32)  # [2, 2F]
    w2t = params["w2"].T.astype(jnp.bfloat16)                       # [2F, F]
    b2 = params["b2"].astype(jnp.float32).reshape(1, F)
    # params["b1"] intentionally dropped: exactly cancelled by training-mode
    # BatchNorm mean subtraction.
    return {"w1t": w1t, "bn": bn, "w2t": w2t, "b2": b2}


def relation_net_forward(features_1, features_2, prep, *,
                         force_two_pass=False, cache_h_override=None):
    """features_1, features_2: [B, F] (f32 or bf16). prep: prepare_params output."""
    B, F = features_1.shape
    twoF = 2 * F
    nb = jnp.array([B], dtype=jnp.int32)        # true batch size (SMEM scalar)
    w1t, bn, w2t, b2 = prep["w1t"], prep["bn"], prep["w2t"], prep["b2"]

    weight_bytes = w1t.size * 2 + w2t.size * 2 + bn.size * 4 + b2.size * 4
    single_bytes = (2 * B * F * 4 + 2 * B * twoF * 4 + B * F * 4 + weight_bytes)

    # ---- Path A: single fused grid step when everything fits in VMEM. ----
    if not force_two_pass and single_bytes <= 8 * 1024 * 1024:
        return pl.pallas_call(
            functools.partial(_single_step_kernel, eps=1e-5),
            out_shape=jax.ShapeDtypeStruct((B, F), jnp.float32),
            grid=(1,),
            in_specs=[
                pl.BlockSpec(memory_space=pltpu.MemorySpace.SMEM),   # nb
                pl.BlockSpec((B, F), lambda i: (0, 0)),              # f1
                pl.BlockSpec((B, F), lambda i: (0, 0)),              # f2
                pl.BlockSpec((twoF, twoF), lambda i: (0, 0)),        # W1^T
                pl.BlockSpec((2, twoF), lambda i: (0, 0)),           # [gamma;beta]
                pl.BlockSpec((twoF, F), lambda i: (0, 0)),           # W2^T
                pl.BlockSpec((1, F), lambda i: (0, 0)),              # b2
            ],
            out_specs=pl.BlockSpec((B, F), lambda i: (0, 0)),
            compiler_params=pltpu.CompilerParams(
                dimension_semantics=("arbitrary",)),
        )(nb, features_1, features_2, w1t, bn, w2t, b2)

    # ---- Path B: batch-tiled two-pass kernel. ----
    tm = min(512, _round_up(B, 8))                    # large tiles: HBM roofline + MXU M
    n_tiles = pl.cdiv(B, tm)                          # ragged last tile handled in-kernel
    cache_bytes = n_tiles * tm * twoF * 4
    cache_h = cache_bytes <= 24 * 1024 * 1024         # fits VMEM -> skip recompute
    if cache_h_override is not None:
        cache_h = bool(cache_h_override)

    tile_bytes = 4 * tm * F * 4 + 2 * tm * F * 4 + tm * twoF * 4
    est_bytes = 2 * weight_bytes + tile_bytes + (cache_bytes if cache_h else 0)
    vmem_limit = 64 * 1024 * 1024 if est_bytes > 24 * 1024 * 1024 else None

    # With the h-cache, pass 1 never reads f1/f2: park their windows on block 0
    # so the pipeline does not DMA the feature tiles at all during pass 1.
    feat_map = (lambda p, j: (j * (1 - p), 0)) if cache_h else (lambda p, j: (j, 0))

    scratch = []
    if cache_h:
        scratch.append(pltpu.VMEM((n_tiles, tm, twoF), jnp.float32))  # cached h
    scratch += [pltpu.VMEM((1, twoF), jnp.float32) for _ in range(4)]  # sum, sumsq, scale, shift

    kernel = functools.partial(_two_pass_kernel, tm=tm, eps=1e-5, cache_h=cache_h)
    return pl.pallas_call(
        kernel,
        out_shape=jax.ShapeDtypeStruct((B, F), jnp.float32),
        grid=(2, n_tiles),                            # (pass, batch tile)
        in_specs=[
            pl.BlockSpec(memory_space=pltpu.MemorySpace.SMEM),        # nb
            pl.BlockSpec((tm, F), feat_map),                          # f1 tile
            pl.BlockSpec((tm, F), feat_map),                          # f2 tile
            pl.BlockSpec((twoF, twoF), lambda p, j: (0, 0)),          # W1^T (resident)
            pl.BlockSpec((2, twoF), lambda p, j: (0, 0)),             # [gamma;beta]
            pl.BlockSpec((twoF, F), lambda p, j: (0, 0)),             # W2^T (resident)
            pl.BlockSpec((1, F), lambda p, j: (0, 0)),                # b2
        ],
        # Pass 0: park the (never-written) output window on block 0.
        # Pass 1: walk the batch tiles -> only real data hits HBM.
        out_specs=pl.BlockSpec((tm, F), lambda p, j: (j * p, 0)),
        scratch_shapes=scratch,
        compiler_params=pltpu.CompilerParams(
            dimension_semantics=("arbitrary", "arbitrary"),
            vmem_limit_bytes=vmem_limit),
    )(nb, features_1, features_2, w1t, bn, w2t, b2)


def init_params(key, feature_dim):
    """Deterministic init mimicking PyTorch defaults (uniform +-1/sqrt(fan_in))."""
    twoF = 2 * feature_dim
    k1, k2, k3, k4 = jax.random.split(key, 4)
    bound = 1.0 / jnp.sqrt(twoF)
    return {
        "w1": jax.random.uniform(k1, (twoF, twoF), jnp.float32, -bound, bound),
        "b1": jax.random.uniform(k2, (twoF,), jnp.float32, -bound, bound),
        "gamma": jnp.ones((twoF,), jnp.float32),
        "beta": jnp.zeros((twoF,), jnp.float32),
        "w2": jax.random.uniform(k3, (feature_dim, twoF), jnp.float32, -bound, bound),
        "b2": jax.random.uniform(k4, (feature_dim,), jnp.float32, -bound, bound),
    }


def reference_forward(features_1, features_2, params):
    """Pure-JAX f32 reference matching the PyTorch module (training mode)."""
    pair = jnp.concatenate([features_1, features_2], axis=1)
    h = pair @ params["w1"].T + params["b1"]
    mean = jnp.mean(h, axis=0, keepdims=True)
    var = jnp.mean((h - mean) ** 2, axis=0, keepdims=True)
    h = (h - mean) / jnp.sqrt(var + 1e-5)
    h = h * params["gamma"] + params["beta"]
    h = jnp.where(h >= 0.0, h, 0.01 * h)
    return h @ params["w2"].T + params["b2"]


if __name__ == "__main__":
    # ---- Test 1: small problem -> single-step fused path. ----
    B, feature_dim = 256, 64
    key = jax.random.PRNGKey(0)
    kf1, kf2, kp = jax.random.split(key, 3)
    f1 = jax.random.normal(kf1, (B, feature_dim), jnp.float32)
    f2 = jax.random.normal(kf2, (B, feature_dim), jnp.float32)
    params = init_params(kp, feature_dim)
    prep = prepare_params(params)

    out = jax.block_until_ready(relation_net_forward(f1, f2, prep))
    ref = reference_forward(f1, f2, params)
    assert out.shape == (B, feature_dim)
    assert jnp.allclose(out, ref, atol=5e-2, rtol=5e-2), "single-step mismatch"

    # ---- Test 2: two-pass tiled path, cached Linear-1 output, ragged last tile. ----
    B2, feature_dim2 = 640, 128          # tm=512 -> 2 tiles, last tile 128 valid rows
    kf1b, kf2b, kpb = jax.random.split(jax.random.PRNGKey(1), 3)
    f1b = jax.random.normal(kf1b, (B2, feature_dim2), jnp.float32)
    f2b = jax.random.normal(kf2b, (B2, feature_dim2), jnp.float32)
    params2 = init_params(kpb, feature_dim2)
    prep2 = prepare_params(params2)

    out2 = jax.block_until_ready(
        relation_net_forward(f1b, f2b, prep2, force_two_pass=True))
    ref2 = reference_forward(f1b, f2b, params2)
    assert out2.shape == (B2, feature_dim2)
    assert jnp.allclose(out2, ref2, atol=5e-2, rtol=5e-2), "two-pass (cached) mismatch"

    # ---- Test 3: two-pass recompute fallback (h-cache disabled). ----
    out3 = jax.block_until_ready(
        relation_net_forward(f1, f2, prep, force_two_pass=True,
                             cache_h_override=False))
    assert jnp.allclose(out3, ref, atol=5e-2, rtol=5e-2), "two-pass (recompute) mismatch"

    print("KERNEL_OK")
</pallas_src>

<mosaic_0001>
module attributes {stable_mosaic.version = 11 : i64} {
  func.func @_single_step_kernel(%arg0: i32, %arg1: memref<1xi32, #tpu.memory_space<smem>>, %arg2: memref<256x64xf32, #tpu.memory_space<vmem>>, %arg3: memref<256x64xf32, #tpu.memory_space<vmem>>, %arg4: memref<128x128xbf16, #tpu.memory_space<vmem>>, %arg5: memref<2x128xf32, #tpu.memory_space<vmem>>, %arg6: memref<128x64xbf16, #tpu.memory_space<vmem>>, %arg7: memref<1x64xf32, #tpu.memory_space<vmem>>, %arg8: memref<256x64xf32, #tpu.memory_space<vmem>>) attributes {dimension_semantics = [#tpu.dimension_semantics<arbitrary>], iteration_bounds = array<i64: 1>, scalar_prefetch = 0 : i64, scratch_operands = 0 : i64, tpu.core_type = #tpu.core_type<tc>, window_params = [{transform_indices = @transform_0, window_bounds = array<i64: 1>}, {pipeline_mode = #tpu.pipeline_mode<synchronous>, transform_indices = @transform_1, window_bounds = array<i64: 256, 64>}, {pipeline_mode = #tpu.pipeline_mode<synchronous>, transform_indices = @transform_2, window_bounds = array<i64: 256, 64>}, {pipeline_mode = #tpu.pipeline_mode<synchronous>, transform_indices = @transform_3, window_bounds = array<i64: 128, 128>}, {pipeline_mode = #tpu.pipeline_mode<synchronous>, transform_indices = @transform_4, window_bounds = array<i64: 2, 128>}, {pipeline_mode = #tpu.pipeline_mode<synchronous>, transform_indices = @transform_5, window_bounds = array<i64: 128, 64>}, {pipeline_mode = #tpu.pipeline_mode<synchronous>, transform_indices = @transform_6, window_bounds = array<i64: 1, 64>}, {pipeline_mode = #tpu.pipeline_mode<synchronous>, transform_indices = @transform_7, window_bounds = array<i64: 256, 64>}]} {
    %c0 = arith.constant 0 : index
    %c0_0 = arith.constant 0 : index
    %0 = vector.load %arg2[%c0, %c0_0] : memref<256x64xf32, #tpu.memory_space<vmem>>, vector<256x64xf32>
    %c0_1 = arith.constant 0 : index
    %c0_2 = arith.constant 0 : index
    %1 = vector.load %arg3[%c0_1, %c0_2] : memref<256x64xf32, #tpu.memory_space<vmem>>, vector<256x64xf32>
    %2 = tpu.concatenate %0, %1 in 1 : vector<256x64xf32>, vector<256x64xf32> -> vector<256x128xf32>
    %3 = arith.truncf %2 : vector<256x128xf32> to vector<256x128xbf16>
    %c0_3 = arith.constant 0 : index
    %c0_4 = arith.constant 0 : index
    %4 = vector.load %arg4[%c0_3, %c0_4] : memref<128x128xbf16, #tpu.memory_space<vmem>>, vector<128x128xbf16>
    %cst = arith.constant dense<0.000000e+00> : vector<256x128xf32>
    %5 = tpu.matmul %3, %4, %cst {dimension_numbers = #tpu.dot_dimension_numbers<[1], [0], [0], [1], [0, 0, 1, 1], [], []>} : vector<256x128xbf16>, vector<128x128xbf16>, vector<256x128xf32> -> vector<256x128xf32>
    %c0_5 = arith.constant 0 : index
    %6 = memref.load %arg1[%c0_5] : memref<1xi32, #tpu.memory_space<smem>>
    %7 = arith.sitofp %6 : i32 to f32
    %cst_6 = arith.constant dense<0.000000e+00> : vector<128xf32>
    %8 = vector.multi_reduction <add>, %5, %cst_6 [0] : vector<256x128xf32> to vector<128xf32>
    %9 = vector.shape_cast %8 : vector<128xf32> to vector<1x128xf32>
    %10 = arith.mulf %5, %5 : vector<256x128xf32>
    %cst_7 = arith.constant dense<0.000000e+00> : vector<128xf32>
    %11 = vector.multi_reduction <add>, %10, %cst_7 [0] : vector<256x128xf32> to vector<128xf32>
    %12 = vector.shape_cast %11 : vector<128xf32> to vector<1x128xf32>
    %13 = vector.broadcast %7 : f32 to vector<1x128xf32>
    %14 = arith.divf %9, %13 : vector<1x128xf32>
    %15 = vector.broadcast %7 : f32 to vector<1x128xf32>
    %16 = arith.divf %12, %15 : vector<1x128xf32>
    %17 = arith.mulf %14, %14 : vector<1x128xf32>
    %18 = arith.subf %16, %17 : vector<1x128xf32>
    %c0_8 = arith.constant 0 : index
    %c0_9 = arith.constant 0 : index
    %19 = vector.load %arg5[%c0_8, %c0_9] : memref<2x128xf32, #tpu.memory_space<vmem>>, vector<1x128xf32>
    %c1 = arith.constant 1 : index
    %c0_10 = arith.constant 0 : index
    %20 = vector.load %arg5[%c1, %c0_10] : memref<2x128xf32, #tpu.memory_space<vmem>>, vector<1x128xf32>
    %cst_11 = arith.constant 9.99999974E-6 : f32
    %21 = vector.broadcast %cst_11 : f32 to vector<1x128xf32>
    %22 = arith.addf %18, %21 : vector<1x128xf32>
    %23 = math.rsqrt %22 : vector<1x128xf32>
    %24 = arith.mulf %19, %23 : vector<1x128xf32>
    %25 = arith.mulf %14, %24 : vector<1x128xf32>
    %26 = arith.subf %20, %25 : vector<1x128xf32>
    %27 = vector.broadcast %24 : vector<1x128xf32> to vector<256x128xf32>
    %28 = arith.mulf %5, %27 : vector<256x128xf32>
    %29 = vector.broadcast %26 : vector<1x128xf32> to vector<256x128xf32>
    %30 = arith.addf %28, %29 : vector<256x128xf32>
    %cst_12 = arith.constant 0.000000e+00 : f32
    %31 = vector.broadcast %cst_12 : f32 to vector<256x128xf32>
    %32 = arith.cmpf oge, %30, %31 : vector<256x128xf32>
    %cst_13 = arith.constant 0.00999999977 : f32
    %33 = vector.broadcast %cst_13 : f32 to vector<256x128xf32>
    %34 = arith.mulf %33, %30 : vector<256x128xf32>
    %35 = arith.select %32, %30, %34 : vector<256x128xi1>, vector<256x128xf32>
    %36 = arith.truncf %35 : vector<256x128xf32> to vector<256x128xbf16>
    %c0_14 = arith.constant 0 : index
    %c0_15 = arith.constant 0 : index
    %37 = vector.load %arg6[%c0_14, %c0_15] : memref<128x64xbf16, #tpu.memory_space<vmem>>, vector<128x64xbf16>
    %cst_16 = arith.constant dense<0.000000e+00> : vector<256x64xf32>
    %38 = tpu.matmul %36, %37, %cst_16 {dimension_numbers = #tpu.dot_dimension_numbers<[1], [0], [0], [1], [0, 0, 1, 1], [], []>} : vector<256x128xbf16>, vector<128x64xbf16>, vector<256x64xf32> -> vector<256x64xf32>
    %c0_17 = arith.constant 0 : index
    %c0_18 = arith.constant 0 : index
    %39 = vector.load %arg7[%c0_17, %c0_18] : memref<1x64xf32, #tpu.memory_space<vmem>>, vector<1x64xf32>
    %40 = vector.broadcast %39 : vector<1x64xf32> to vector<256x64xf32>
    %41 = arith.addf %38, %40 : vector<256x64xf32>
    %c0_19 = arith.constant 0 : index
    %c0_20 = arith.constant 0 : index
    %42 = vector.load %arg8[%c0_19, %c0_20] : memref<256x64xf32, #tpu.memory_space<vmem>>, vector<256x64xf32>
    tpu.vector_store %arg8[%c0_19, %c0_20], %41 {strides = array<i32>} : memref<256x64xf32, #tpu.memory_space<vmem>>, vector<256x64xf32>,
    return
  }
  func.func @transform_0(%arg0: i32) -> i32 {
    %c0_i32 = arith.constant 0 : i32
    %c0_i32_0 = arith.constant 0 : i32
    return %c0_i32 : i32
  }
  func.func @transform_1(%arg0: i32) -> (i32, i32) {
    %c0_i32 = arith.constant 0 : i32
    %c0_i32_0 = arith.constant 0 : i32
    %c0_i32_1 = arith.constant 0 : i32
    return %c0_i32, %c0_i32_0 : i32, i32
  }
  func.func @transform_2(%arg0: i32) -> (i32, i32) {
    %c0_i32 = arith.constant 0 : i32
    %c0_i32_0 = arith.constant 0 : i32
    %c0_i32_1 = arith.constant 0 : i32
    return %c0_i32, %c0_i32_0 : i32, i32
  }
  func.func @transform_3(%arg0: i32) -> (i32, i32) {
    %c0_i32 = arith.constant 0 : i32
    %c0_i32_0 = arith.constant 0 : i32
    %c0_i32_1 = arith.constant 0 : i32
    return %c0_i32, %c0_i32_0 : i32, i32
  }
  func.func @transform_4(%arg0: i32) -> (i32, i32) {
    %c0_i32 = arith.constant 0 : i32
    %c0_i32_0 = arith.constant 0 : i32
    %c0_i32_1 = arith.constant 0 : i32
    return %c0_i32, %c0_i32_0 : i32, i32
  }
  func.func @transform_5(%arg0: i32) -> (i32, i32) {
    %c0_i32 = arith.constant 0 : i32
    %c0_i32_0 = arith.constant 0 : i32
    %c0_i32_1 = arith.constant 0 : i32
    return %c0_i32, %c0_i32_0 : i32, i32
  }
  func.func @transform_6(%arg0: i32) -> (i32, i32) {
    %c0_i32 = arith.constant 0 : i32
    %c0_i32_0 = arith.constant 0 : i32
    %c0_i32_1 = arith.constant 0 : i32
    return %c0_i32, %c0_i32_0 : i32, i32
  }
  func.func @transform_7(%arg0: i32) -> (i32, i32) {
    %c0_i32 = arith.constant 0 : i32
    %c0_i32_0 = arith.constant 0 : i32
    %c0_i32_1 = arith.constant 0 : i32
    return %c0_i32, %c0_i32_0 : i32, i32
  }
}

</mosaic_0001>

<llo_original>
// kernel: tpu_custom_call.1
$region0: #{tpu_custom_call.1}
  #allocation0 [shape = 'u32[]', space=smem, size = 0x4, offset = 0x4, fixed_abs, tag = 'smem constant byte address 0x4 - core index']
  #allocation1 [shape = 'u32[144,128]{1,0:T(1,128)}', space=vmem, size = 0x12000, scoped, tag = 'internal scratch']
  #allocation2 [shape = 's32[1]{0:T(128)S(6)}', space=smem, size = 0x200, scoped, tag = 'scoped memory for tpu_custom_call.1']
  %s0 = inlined_call_operand.<no memory space> [shape: s32[1], index: 0, kind: input, shape index: {}]
  %s1 = inlined_call_operand.vmem [shape: f32[256,64], index: 1, kind: input, shape index: {}]
  %s2 = inlined_call_operand.vmem [shape: f32[256,64], index: 2, kind: input, shape index: {}]
  %s3 = inlined_call_operand.vmem [shape: bf16[128,128], index: 3, kind: input, shape index: {}]
  %s4 = inlined_call_operand.vmem [shape: f32[2,128], index: 4, kind: input, shape index: {}]
  %s5 = inlined_call_operand.vmem [shape: bf16[128,64], index: 5, kind: input, shape index: {}]
  %s6 = inlined_call_operand.vmem [shape: f32[1,64], index: 6, kind: input, shape index: {}]
  %s7 = inlined_call_operand.vmem [shape: f32[256,64], index: 7, kind: output, shape index: {}]
  %s8 = sld [smem:[#allocation0]]
  $region38: #{tpu_custom_call.1} parent=0
    _
  %s10 = ssub.s32 1, %s8
  %s11 = scalar_select 0, %s10, %s8
  %12 = sst [smem:[#allocation2]] %s0
  // Predicated region
  $region2: #{tpu_custom_call.1} parent=0 // pred_check
    _
  $region3: #{tpu_custom_call.1} parent=0 // pred_check_branch
    %14 = sbr.rel (0) target = $region5
  $region4: #{tpu_custom_call.1} parent=0 // pred_region
    _
  $region5: #{tpu_custom_call.1} parent=0 // pred_fallthru
    _
  // Predicated region
  $region6: #{tpu_custom_call.1} parent=0 // pred_check
    _
  $region7: #{tpu_custom_call.1} parent=0 // pred_check_branch
    %16 = sbr.rel (0) target = $region9
  $region8: #{tpu_custom_call.1} parent=0 // pred_region
    _
  $region9: #{tpu_custom_call.1} parent=0 // pred_fallthru
    _
  // Predicated region
  $region10: #{tpu_custom_call.1} parent=0 // pred_check
    _
  $region11: #{tpu_custom_call.1} parent=0 // pred_check_branch
    %18 = sbr.rel (0) target = $region13
  $region12: #{tpu_custom_call.1} parent=0 // pred_region
    _
  $region13: #{tpu_custom_call.1} parent=0 // pred_fallthru
    _
  // Predicated region
  $region14: #{tpu_custom_call.1} parent=0 // pred_check
    _
  $region15: #{tpu_custom_call.1} parent=0 // pred_check_branch
    %20 = sbr.rel (0) target = $region17
  $region16: #{tpu_custom_call.1} parent=0 // pred_region
    _
  $region17: #{tpu_custom_call.1} parent=0 // pred_fallthru
    _
  // Predicated region
  $region18: #{tpu_custom_call.1} parent=0 // pred_check
    _
  $region19: #{tpu_custom_call.1} parent=0 // pred_check_branch
    %22 = sbr.rel (0) target = $region21
  $region20: #{tpu_custom_call.1} parent=0 // pred_region
    _
  $region21: #{tpu_custom_call.1} parent=0 // pred_fallthru
    _
  // Predicated region
  $region22: #{tpu_custom_call.1} parent=0 // pred_check
    _
  $region23: #{tpu_custom_call.1} parent=0 // pred_check_branch
    %24 = sbr.rel (0) target = $region25
  $region24: #{tpu_custom_call.1} parent=0 // pred_region
    _
  $region25: #{tpu_custom_call.1} parent=0 // pred_fallthru
    _
  // Predicated region
  $region26: #{tpu_custom_call.1} parent=0 // pred_check
    _
  $region27: #{tpu_custom_call.1} parent=0 // pred_check_branch
    %26 = sbr.rel (0) target = $region29
  $region28: #{tpu_custom_call.1} parent=0 // pred_region
    _
  $region29: #{tpu_custom_call.1} parent=0 // pred_fallthru
    _
  %v28 = vld [vmem:[%s1] sm:$0xff]
  %v29 = vld [vmem:[%s1 + $0x8] sm:$0xff]
  %v30 = vld [vmem:[%s1 + $0x10] sm:$0xff]
  %v31 = vld [vmem:[%s1 + $0x18] sm:$0xff]
  %v32 = vld [vmem:[%s1 + $0x20] sm:$0xff]
  %v33 = vld [vmem:[%s1 + $0x28] sm:$0xff]
  %v34 = vld [vmem:[%s1 + $0x30] sm:$0xff]
  %v35 = vld [vmem:[%s1 + $0x38] sm:$0xff]
  %v36 = vld [vmem:[%s1 + $0x40] sm:$0xff]
  %v37 = vld [vmem:[%s1 + $0x48] sm:$0xff]
  %v38 = vld [vmem:[%s1 + $0x50] sm:$0xff]
  %v39 = vld [vmem:[%s1 + $0x58] sm:$0xff]
  %v40 = vld [vmem:[%s1 + $0x60] sm:$0xff]
  %v41 = vld [vmem:[%s1 + $0x68] sm:$0xff]
  %v42 = vld [vmem:[%s1 + $0x70] sm:$0xff]
  %v43 = vld [vmem:[%s1 + $0x78] sm:$0xff]
  %v44 = vld [vmem:[%s1 + $0x80] sm:$0xff]
  %v45 = vld [vmem:[%s1 + $0x88] sm:$0xff]
  %v46 = vld [vmem:[%s1 + $0x90] sm:$0xff]
  %v47 = vld [vmem:[%s1 + $0x98] sm:$0xff]
  %v48 = vld [vmem:[%s1 + $0xa0] sm:$0xff]
  %v49 = vld [vmem:[%s1 + $0xa8] sm:$0xff]
  %v50 = vld [vmem:[%s1 + $0xb0] sm:$0xff]
  %v51 = vld [vmem:[%s1 + $0xb8] sm:$0xff]
  %v52 = vld [vmem:[%s1 + $0xc0] sm:$0xff]
  %v53 = vld [vmem:[%s1 + $0xc8] sm:$0xff]
  %v54 = vld [vmem:[%s1 + $0xd0] sm:$0xff]
  %v55 = vld [vmem:[%s1 + $0xd8] sm:$0xff]
  %v56 = vld [vmem:[%s1 + $0xe0] sm:$0xff]
  %v57 = vld [vmem:[%s1 + $0xe8] sm:$0xff]
  %v58 = vld [vmem:[%s1 + $0xf0] sm:$0xff]
  %v59 = vld [vmem:[%s1 + $0xf8] sm:$0xff]
  %v60 = vld [vmem:[%s2] sm:$0xff]
  %v61 = vld [vmem:[%s2 + $0x8] sm:$0xff]
  %v62 = vld [vmem:[%s2 + $0x10] sm:$0xff]
  %v63 = vld [vmem:[%s2 + $0x18] sm:$0xff]
  %v64 = vld [vmem:[%s2 + $0x20] sm:$0xff]
  %v65 = vld [vmem:[%s2 + $0x28] sm:$0xff]
  %v66 = vld [vmem:[%s2 + $0x30] sm:$0xff]
  %v67 = vld [vmem:[%s2 + $0x38] sm:$0xff]
  %v68 = vld [vmem:[%s2 + $0x40] sm:$0xff]
  %v69 = vld [vmem:[%s2 + $0x48] sm:$0xff]
  %v70 = vld [vmem:[%s2 + $0x50] sm:$0xff]
  %v71 = vld [vmem:[%s2 + $0x58] sm:$0xff]
  %v72 = vld [vmem:[%s2 + $0x60] sm:$0xff]
  %v73 = vld [vmem:[%s2 + $0x68] sm:$0xff]
  %v74 = vld [vmem:[%s2 + $0x70] sm:$0xff]
  %v75 = vld [vmem:[%s2 + $0x78] sm:$0xff]
  %v76 = vld [vmem:[%s2 + $0x80] sm:$0xff]
  %v77 = vld [vmem:[%s2 + $0x88] sm:$0xff]
  %v78 = vld [vmem:[%s2 + $0x90] sm:$0xff]
  %v79 = vld [vmem:[%s2 + $0x98] sm:$0xff]
  %v80 = vld [vmem:[%s2 + $0xa0] sm:$0xff]
  %v81 = vld [vmem:[%s2 + $0xa8] sm:$0xff]
  %v82 = vld [vmem:[%s2 + $0xb0] sm:$0xff]
  %v83 = vld [vmem:[%s2 + $0xb8] sm:$0xff]
  %v84 = vld [vmem:[%s2 + $0xc0] sm:$0xff]
  %v85 = vld [vmem:[%s2 + $0xc8] sm:$0xff]
  %v86 = vld [vmem:[%s2 + $0xd0] sm:$0xff]
  %v87 = vld [vmem:[%s2 + $0xd8] sm:$0xff]
  %v88 = vld [vmem:[%s2 + $0xe0] sm:$0xff]
  %v89 = vld [vmem:[%s2 + $0xe8] sm:$0xff]
  %v90 = vld [vmem:[%s2 + $0xf0] sm:$0xff]
  %v91 = vld [vmem:[%s2 + $0xf8] sm:$0xff]
  %124 = vrot.lane.b32.xlu0 %v60, 64
  %v125 = vpop.permute.xlu0 %124
  %126 = vrot.lane.b32.xlu0 %v61, 64
  %v127 = vpop.permute.xlu0 %126
  %128 = vrot.lane.b32.xlu0 %v62, 64
  %v129 = vpop.permute.xlu0 %128
  %130 = vrot.lane.b32.xlu0 %v63, 64
  %v131 = vpop.permute.xlu0 %130
  %132 = vrot.lane.b32.xlu0 %v64, 64
  %v133 = vpop.permute.xlu0 %132
  %134 = vrot.lane.b32.xlu0 %v65, 64
  %v135 = vpop.permute.xlu0 %134
  %136 = vrot.lane.b32.xlu0 %v66, 64
  %v137 = vpop.permute.xlu0 %136
  %138 = vrot.lane.b32.xlu0 %v67, 64
  %v139 = vpop.permute.xlu0 %138
  %140 = vrot.lane.b32.xlu0 %v68, 64
  %v141 = vpop.permute.xlu0 %140
  %142 = vrot.lane.b32.xlu0 %v69, 64
  %v143 = vpop.permute.xlu0 %142
  %144 = vrot.lane.b32.xlu0 %v70, 64
  %v145 = vpop.permute.xlu0 %144
  %146 = vrot.lane.b32.xlu0 %v71, 64
  %v147 = vpop.permute.xlu0 %146
  %148 = vrot.lane.b32.xlu0 %v72, 64
  %v149 = vpop.permute.xlu0 %148
  %150 = vrot.lane.b32.xlu0 %v73, 64
  %v151 = vpop.permute.xlu0 %150
  %152 = vrot.lane.b32.xlu0 %v74, 64
  %v153 = vpop.permute.xlu0 %152
  %154 = vrot.lane.b32.xlu0 %v75, 64
  %v155 = vpop.permute.xlu0 %154
  %156 = vrot.lane.b32.xlu0 %v76, 64
  %v157 = vpop.permute.xlu0 %156
  %158 = vrot.lane.b32.xlu0 %v77, 64
  %v159 = vpop.permute.xlu0 %158
  %160 = vrot.lane.b32.xlu0 %v78, 64
  %v161 = vpop.permute.xlu0 %160
  %162 = vrot.lane.b32.xlu0 %v79, 64
  %v163 = vpop.permute.xlu0 %162
  %164 = vrot.lane.b32.xlu0 %v80, 64
  %v165 = vpop.permute.xlu0 %164
  %166 = vrot.lane.b32.xlu0 %v81, 64
  %v167 = vpop.permute.xlu0 %166
  %168 = vrot.lane.b32.xlu0 %v82, 64
  %v169 = vpop.permute.xlu0 %168
  %170 = vrot.lane.b32.xlu0 %v83, 64
  %v171 = vpop.permute.xlu0 %170
  %172 = vrot.lane.b32.xlu0 %v84, 64
  %v173 = vpop.permute.xlu0 %172
  %174 = vrot.lane.b32.xlu0 %v85, 64
  %v175 = vpop.permute.xlu0 %174
  %176 = vrot.lane.b32.xlu0 %v86, 64
  %v177 = vpop.permute.xlu0 %176
  %178 = vrot.lane.b32.xlu0 %v87, 64
  %v179 = vpop.permute.xlu0 %178
  %180 = vrot.lane.b32.xlu0 %v88, 64
  %v181 = vpop.permute.xlu0 %180
  %182 = vrot.lane.b32.xlu0 %v89, 64
  %v183 = vpop.permute.xlu0 %182
  %184 = vrot.lane.b32.xlu0 %v90, 64
  %v185 = vpop.permute.xlu0 %184
  %186 = vrot.lane.b32.xlu0 %v91, 64
  %v187 = vpop.permute.xlu0 %186
  %vm220 = vcmask 523264
  %v221 = vsel %vm220, %v28, %v125
  %v222 = vsel %vm220, %v29, %v127
  %v223 = vsel %vm220, %v30, %v129
  %v224 = vsel %vm220, %v31, %v131
  %v225 = vsel %vm220, %v32, %v133
  %v226 = vsel %vm220, %v33, %v135
  %v227 = vsel %vm220, %v34, %v137
  %v228 = vsel %vm220, %v35, %v139
  %v229 = vsel %vm220, %v36, %v141
  %v230 = vsel %vm220, %v37, %v143
  %v231 = vsel %vm220, %v38, %v145
  %v232 = vsel %vm220, %v39, %v147
  %v233 = vsel %vm220, %v40, %v149
  %v234 = vsel %vm220, %v41, %v151
  %v235 = vsel %vm220, %v42, %v153
  %v236 = vsel %vm220, %v43, %v155
  %v237 = vsel %vm220, %v44, %v157
  %v238 = vsel %vm220, %v45, %v159
  %v239 = vsel %vm220, %v46, %v161
  %v240 = vsel %vm220, %v47, %v163
  %v241 = vsel %vm220, %v48, %v165
  %v242 = vsel %vm220, %v49, %v167
  %v243 = vsel %vm220, %v50, %v169
  %v244 = vsel %vm220, %v51, %v171
  %v245 = vsel %vm220, %v52, %v173
  %v246 = vsel %vm220, %v53, %v175
  %v247 = vsel %vm220, %v54, %v177
  %v248 = vsel %vm220, %v55, %v179
  %v249 = vsel %vm220, %v56, %v181
  %v250 = vsel %vm220, %v57, %v183
  %v251 = vsel %vm220, %v58, %v185
  %v252 = vsel %vm220, %v59, %v187
  %v253 = vpack.c.bf16 %v222, %v221
  %v254 = vpack.c.bf16 %v224, %v223
  %v255 = vpack.c.bf16 %v226, %v225
  %v256 = vpack.c.bf16 %v228, %v227
  %v257 = vpack.c.bf16 %v230, %v229
  %v258 = vpack.c.bf16 %v232, %v231
  %v259 = vpack.c.bf16 %v234, %v233
  %v260 = vpack.c.bf16 %v236, %v235
  %v261 = vpack.c.bf16 %v238, %v237
  %v262 = vpack.c.bf16 %v240, %v239
  %v263 = vpack.c.bf16 %v242, %v241
  %v264 = vpack.c.bf16 %v244, %v243
  %v265 = vpack.c.bf16 %v246, %v245
  %v266 = vpack.c.bf16 %v248, %v247
  %v267 = vpack.c.bf16 %v250, %v249
  %v268 = vpack.c.bf16 %v252, %v251
  %v269 = vld [vmem:[%s3] sm:$0xf]
  %v270 = vld [vmem:[%s3 + $0x4] sm:$0xf]
  %v271 = vld [vmem:[%s3 + $0x8] sm:$0xf]
  %v272 = vld [vmem:[%s3 + $0xc] sm:$0xf]
  %v273 = vld [vmem:[%s3 + $0x10] sm:$0xf]
  %v274 = vld [vmem:[%s3 + $0x14] sm:$0xf]
  %v275 = vld [vmem:[%s3 + $0x18] sm:$0xf]
  %v276 = vld [vmem:[%s3 + $0x1c] sm:$0xf]
  %v277 = vld [vmem:[%s3 + $0x20] sm:$0xf]
  %v278 = vld [vmem:[%s3 + $0x24] sm:$0xf]
  %v279 = vld [vmem:[%s3 + $0x28] sm:$0xf]
  %v280 = vld [vmem:[%s3 + $0x2c] sm:$0xf]
  %v281 = vld [vmem:[%s3 + $0x30] sm:$0xf]
  %v282 = vld [vmem:[%s3 + $0x34] sm:$0xf]
  %v283 = vld [vmem:[%s3 + $0x38] sm:$0xf]
  %v284 = vld [vmem:[%s3 + $0x3c] sm:$0xf]
  %v301 = vunpack.c.l.b16 %v269
  %v302 = vunpack.c.l.b16 %v270
  %v303 = vunpack.c.l.b16 %v271
  %v304 = vunpack.c.l.b16 %v272
  %v305 = vunpack.c.l.b16 %v273
  %v306 = vunpack.c.l.b16 %v274
  %v307 = vunpack.c.l.b16 %v275
  %v308 = vunpack.c.l.b16 %v276
  %v309 = vunpack.c.l.b16 %v277
  %v310 = vunpack.c.l.b16 %v278
  %v311 = vunpack.c.l.b16 %v279
  %v312 = vunpack.c.l.b16 %v280
  %v313 = vunpack.c.l.b16 %v281
  %v314 = vunpack.c.l.b16 %v282
  %v315 = vunpack.c.l.b16 %v283
  %v316 = vunpack.c.l.b16 %v284
  %v317 = vpack.c.b16 %v302, %v301
  %v318 = vpack.c.b16 %v304, %v303
  %v319 = vpack.c.b16 %v306, %v305
  %v320 = vpack.c.b16 %v308, %v307
  %v321 = vpack.c.b16 %v310, %v309
  %v322 = vpack.c.b16 %v312, %v311
  %v323 = vpack.c.b16 %v314, %v313
  %v324 = vpack.c.b16 %v316, %v315
  %333 = vmatprep.subr.bf16.mxu0 0
  %334 = vmatpush1.bf16.msra.mxu0 %v324
  %335 = vmatprep.subr.bf16.mxu0 0
  %336 = vmatpush1.bf16.msra.mxu0 %v323
  %337 = vmatprep.subr.bf16.mxu0 0
  %338 = vmatpush1.bf16.msra.mxu0 %v322
  %339 = vmatprep.subr.bf16.mxu0 0
  %340 = vmatpush1.bf16.msra.mxu0 %v321
  %341 = vmatprep.subr.bf16.mxu0 0
  %342 = vmatpush1.bf16.msra.mxu0 %v320
  %343 = vmatprep.subr.bf16.mxu0 0
  %344 = vmatpush1.bf16.msra.mxu0 %v319
  %345 = vmatprep.subr.bf16.mxu0 0
  %346 = vmatpush1.bf16.msra.mxu0 %v318
  %347 = vmatprep.subr.bf16.mxu0 0
  %348 = vmatpush1.bf16.msra.mxu0 %v317
  %349 = vmatprep.subr.bf16.mxu0 0
  %350 = vmatpush2.bf16.msra.mxu0 0
  %351 = vmatprep.subr.bf16.mxu0 0
  %352 = vmatpush2.bf16.msra.mxu0 0
  %353 = vmatprep.subr.bf16.mxu0 0
  %354 = vmatpush2.bf16.msra.mxu0 0
  %355 = vmatprep.subr.bf16.mxu0 0
  %356 = vmatpush2.bf16.msra.mxu0 0
  %357 = vmatprep.subr.bf16.mxu0 0
  %358 = vmatpush2.bf16.msra.mxu0 0
  %359 = vmatprep.subr.bf16.mxu0 0
  %360 = vmatpush2.bf16.msra.mxu0 0
  %361 = vmatprep.subr.bf16.mxu0 0
  %362 = vmatpush2.bf16.msra.mxu0 0
  %363 = vmatprep.subr.bf16.mxu0 0
  %364 = vmatpush2.bf16.msra.mxu0 0
  %365 = vmatprep.mubr.bf16.mxu0 0
  %366 = vmatmul.mubr.bf16.gmra.mxu0 %v253
  %v367 = vpop.f32.mrf.mxu0
  %v368 = vadd.f32 0.0, %v367
  %v369 = vpop.f32.mrf.mxu0
  %v370 = vpop.f32.mrf.mxu0
  %v371 = vadd.f32 0.0, %v370
  %v372 = vpop.f32.mrf.mxu0
  %373 = vmatprep.mubr.bf16.mxu0 0
  %374 = vmatmul.mubr.bf16.gmra.mxu0 %v254
  %v375 = vpop.f32.mrf.mxu0
  %v376 = vadd.f32 0.0, %v375
  %v377 = vpop.f32.mrf.mxu0
  %v378 = vpop.f32.mrf.mxu0
  %v379 = vadd.f32 0.0, %v378
  %v380 = vpop.f32.mrf.mxu0
  %381 = vmatprep.mubr.bf16.mxu0 0
  %382 = vmatmul.mubr.bf16.gmra.mxu0 %v255
  %v383 = vpop.f32.mrf.mxu0
  %v384 = vadd.f32 0.0, %v383
  %v385 = vpop.f32.mrf.mxu0
  %v386 = vpop.f32.mrf.mxu0
  %v387 = vadd.f32 0.0, %v386
  %v388 = vpop.f32.mrf.mxu0
  %389 = vmatprep.mubr.bf16.mxu0 0
  %390 = vmatmul.mubr.bf16.gmra.mxu0 %v256
  %v391 = vpop.f32.mrf.mxu0
  %v392 = vadd.f32 0.0, %v391
  %v393 = vpop.f32.mrf.mxu0
  %v394 = vpop.f32.mrf.mxu0
  %v395 = vadd.f32 0.0, %v394
  %v396 = vpop.f32.mrf.mxu0
  %397 = vmatprep.mubr.bf16.mxu0 0
  %398 = vmatmul.mubr.bf16.gmra.mxu0 %v257
  %v399 = vpop.f32.mrf.mxu0
  %v400 = vadd.f32 0.0, %v399
  %v401 = vpop.f32.mrf.mxu0
  %v402 = vpop.f32.mrf.mxu0
  %v403 = vadd.f32 0.0, %v402
  %v404 = vpop.f32.mrf.mxu0
  %405 = vmatprep.mubr.bf16.mxu0 0
  %406 = vmatmul.mubr.bf16.gmra.mxu0 %v258
  %v407 = vpop.f32.mrf.mxu0
  %v408 = vadd.f32 0.0, %v407
  %v409 = vpop.f32.mrf.mxu0
  %v410 = vpop.f32.mrf.mxu0
  %v411 = vadd.f32 0.0, %v410
  %v412 = vpop.f32.mrf.mxu0
  %413 = vmatprep.mubr.bf16.mxu0 0
  %414 = vmatmul.mubr.bf16.gmra.mxu0 %v259
  %v415 = vpop.f32.mrf.mxu0
  %v416 = vadd.f32 0.0, %v415
  %v417 = vpop.f32.mrf.mxu0
  %v418 = vpop.f32.mrf.mxu0
  %v419 = vadd.f32 0.0, %v418
  %v420 = vpop.f32.mrf.mxu0
  %421 = vmatprep.mubr.bf16.mxu0 0
  %422 = vmatmul.mubr.bf16.gmra.mxu0 %v260
  %v423 = vpop.f32.mrf.mxu0
  %v424 = vadd.f32 0.0, %v423
  %v425 = vpop.f32.mrf.mxu0
  %v426 = vpop.f32.mrf.mxu0
  %v427 = vadd.f32 0.0, %v426
  %v428 = vpop.f32.mrf.mxu0
  %429 = vmatprep.mubr.bf16.mxu0 0
  %430 = vmatmul.mubr.bf16.gmra.mxu0 %v261
  %v431 = vpop.f32.mrf.mxu0
  %v432 = vadd.f32 0.0, %v431
  %v433 = vpop.f32.mrf.mxu0
  %v434 = vpop.f32.mrf.mxu0
  %v435 = vadd.f32 0.0, %v434
  %v436 = vpop.f32.mrf.mxu0
  %437 = vmatprep.mubr.bf16.mxu0 0
  %438 = vmatmul.mubr.bf16.gmra.mxu0 %v262
  %v439 = vpop.f32.mrf.mxu0
  %v440 = vadd.f32 0.0, %v439
  %v441 = vpop.f32.mrf.mxu0
  %v442 = vpop.f32.mrf.mxu0
  %v443 = vadd.f32 0.0, %v442
  %v444 = vpop.f32.mrf.mxu0
  %445 = vmatprep.mubr.bf16.mxu0 0
  %446 = vmatmul.mubr.bf16.gmra.mxu0 %v263
  %v447 = vpop.f32.mrf.mxu0
  %v448 = vadd.f32 0.0, %v447
  %v449 = vpop.f32.mrf.mxu0
  %v450 = vpop.f32.mrf.mxu0
  %v451 = vadd.f32 0.0, %v450
  %v452 = vpop.f32.mrf.mxu0
  %453 = vmatprep.mubr.bf16.mxu0 0
  %454 = vmatmul.mubr.bf16.gmra.mxu0 %v264
  %v455 = vpop.f32.mrf.mxu0
  %v456 = vadd.f32 0.0, %v455
  %v457 = vpop.f32.mrf.mxu0
  %v458 = vpop.f32.mrf.mxu0
  %v459 = vadd.f32 0.0, %v458
  %v460 = vpop.f32.mrf.mxu0
  %461 = vmatprep.mubr.bf16.mxu0 0
  %462 = vmatmul.mubr.bf16.gmra.mxu0 %v265
  %v463 = vpop.f32.mrf.mxu0
  %v464 = vadd.f32 0.0, %v463
  %v465 = vpop.f32.mrf.mxu0
  %v466 = vpop.f32.mrf.mxu0
  %v467 = vadd.f32 0.0, %v466
  %v468 = vpop.f32.mrf.mxu0
  %469 = vmatprep.mubr.bf16.mxu0 0
  %470 = vmatmul.mubr.bf16.gmra.mxu0 %v266
  %v471 = vpop.f32.mrf.mxu0
  %v472 = vadd.f32 0.0, %v471
  %v473 = vpop.f32.mrf.mxu0
  %v474 = vpop.f32.mrf.mxu0
  %v475 = vadd.f32 0.0, %v474
  %v476 = vpop.f32.mrf.mxu0
  %477 = vmatprep.mubr.bf16.mxu0 0
  %478 = vmatmul.mubr.bf16.gmra.mxu0 %v267
  %v479 = vpop.f32.mrf.mxu0
  %v480 = vadd.f32 0.0, %v479
  %v481 = vpop.f32.mrf.mxu0
  %v482 = vpop.f32.mrf.mxu0
  %v483 = vadd.f32 0.0, %v482
  %v484 = vpop.f32.mrf.mxu0
  %485 = vmatprep.mubr.bf16.mxu0 0
  %486 = vmatmul.mubr.bf16.gmra.mxu0 %v268
  %v487 = vpop.f32.mrf.mxu0
  %v488 = vadd.f32 0.0, %v487
  %v489 = vpop.f32.mrf.mxu0
  %v490 = vpop.f32.mrf.mxu0
  %v491 = vadd.f32 0.0, %v490
  %v492 = vpop.f32.mrf.mxu0
  %493 = vdwg.mxu0
  %s494 = sld [smem:[#allocation2]]
  %s495 = scvt.s32.f32 %s494
  %v496 = vadd.f32 %v368, %v371
  %v497 = vadd.f32 %v496, %v376
  %v498 = vadd.f32 %v497, %v379
  %v499 = vadd.f32 %v498, %v384
  %v500 = vadd.f32 %v499, %v387
  %v501 = vadd.f32 %v500, %v392
  %v502 = vadd.f32 %v501, %v395
  %v503 = vadd.f32 %v502, %v400
  %v504 = vadd.f32 %v503, %v403
  %v505 = vadd.f32 %v504, %v408
  %v506 = vadd.f32 %v505, %v411
  %v507 = vadd.f32 %v506, %v416
  %v508 = vadd.f32 %v507, %v419
  %v509 = vadd.f32 %v508, %v424
  %v510 = vadd.f32 %v509, %v427
  %v511 = vadd.f32 %v510, %v432
  %v512 = vadd.f32 %v511, %v435
  %v513 = vadd.f32 %v512, %v440
  %v514 = vadd.f32 %v513, %v443
  %v515 = vadd.f32 %v514, %v448
  %v516 = vadd.f32 %v515, %v451
  %v517 = vadd.f32 %v516, %v456
  %v518 = vadd.f32 %v517, %v459
  %v519 = vadd.f32 %v518, %v464
  %v520 = vadd.f32 %v519, %v467
  %v521 = vadd.f32 %v520, %v472
  %v522 = vadd.f32 %v521, %v475
  %v523 = vadd.f32 %v522, %v480
  %v524 = vadd.f32 %v523, %v483
  %v525 = vadd.f32 %v524, %v488
  %v526 = vadd.f32 %v525, %v491
  %v527 = vrot.slane %v526, 4
  %v528 = vadd.f32 %v526, %v527
  %v529 = vrot.slane %v528, 2
  %v530 = vadd.f32 %v528, %v529
  %v531 = vrot.slane %v530, 1
  %v532 = vadd.f32 %v530, %v531
  %v533 = vmul.f32 %v368, %v368
  %v534 = vmul.f32 %v371, %v371
  %v535 = vmul.f32 %v376, %v376
  %v536 = vmul.f32 %v379, %v379
  %v537 = vmul.f32 %v384, %v384
  %v538 = vmul.f32 %v387, %v387
  %v539 = vmul.f32 %v392, %v392
  %v540 = vmul.f32 %v395, %v395
  %v541 = vmul.f32 %v400, %v400
  %v542 = vmul.f32 %v403, %v403
  %v543 = vmul.f32 %v408, %v408
  %v544 = vmul.f32 %v411, %v411
  %v545 = vmul.f32 %v416, %v416
  %v546 = vmul.f32 %v419, %v419
  %v547 = vmul.f32 %v424, %v424
  %v548 = vmul.f32 %v427, %v427
  %v549 = vmul.f32 %v432, %v432
  %v550 = vmul.f32 %v435, %v435
  %v551 = vmul.f32 %v440, %v440
  %v552 = vmul.f32 %v443, %v443
  %v553 = vmul.f32 %v448, %v448
  %v554 = vmul.f32 %v451, %v451
  %v555 = vmul.f32 %v456, %v456
  %v556 = vmul.f32 %v459, %v459
  %v557 = vmul.f32 %v464, %v464
  %v558 = vmul.f32 %v467, %v467
  %v559 = vmul.f32 %v472, %v472
  %v560 = vmul.f32 %v475, %v475
  %v561 = vmul.f32 %v480, %v480
  %v562 = vmul.f32 %v483, %v483
  %v563 = vmul.f32 %v488, %v488
  %v564 = vmul.f32 %v491, %v491
  %v565 = vadd.f32 %v533, %v534
  %v566 = vadd.f32 %v565, %v535
  %v567 = vadd.f32 %v566, %v536
  %v568 = vadd.f32 %v567, %v537
  %v569 = vadd.f32 %v568, %v538
  %v570 = vadd.f32 %v569, %v539
  %v571 = vadd.f32 %v570, %v540
  %v572 = vadd.f32 %v571, %v541
  %v573 = vadd.f32 %v572, %v542
  %v574 = vadd.f32 %v573, %v543
  %v575 = vadd.f32 %v574, %v544
  %v576 = vadd.f32 %v575, %v545
  %v577 = vadd.f32 %v576, %v546
  %v578 = vadd.f32 %v577, %v547
  %v579 = vadd.f32 %v578, %v548
  %v580 = vadd.f32 %v579, %v549
  %v581 = vadd.f32 %v580, %v550
  %v582 = vadd.f32 %v581, %v551
  %v583 = vadd.f32 %v582, %v552
  %v584 = vadd.f32 %v583, %v553
  %v585 = vadd.f32 %v584, %v554
  %v586 = vadd.f32 %v585, %v555
  %v587 = vadd.f32 %v586, %v556
  %v588 = vadd.f32 %v587, %v557
  %v589 = vadd.f32 %v588, %v558
  %v590 = vadd.f32 %v589, %v559
  %v591 = vadd.f32 %v590, %v560
  %v592 = vadd.f32 %v591, %v561
  %v593 = vadd.f32 %v592, %v562
  %v594 = vadd.f32 %v593, %v563
  %v595 = vadd.f32 %v594, %v564
  %v596 = vrot.slane %v595, 4
  %v597 = vadd.f32 %v595, %v596
  %v598 = vrot.slane %v597, 2
  %v599 = vadd.f32 %v597, %v598
  %v600 = vrot.slane %v599, 1
  %v601 = vadd.f32 %v599, %v600
  %v602 = vstv %s495
  %v603 = vrcp.pop %v602
  %v604 = vmul.f32 %v532, %v603
  %v605 = vmul.f32 %v601, %v603
  %v606 = vmul.f32 %v604, %v604
  %v607 = vsub.f32 %v605, %v606
  %v608 = vld [vmem:[%s4] sm:$0x1]
  %v609 = vld [vmem:[%s4 + $0x1] sm:$0x1]
  %v610 = vadd.f32 %v607, 1e-05
  %v611 = vrsqrt.pop %v610
  %v612 = vmul.f32 %v608, %v611
  %v613 = vmul.f32 %v604, %v612
  %v614 = vsub.f32 %v609, %v613
  %v615 = vlaneseq
  %v616 = vshrl.u32 %v615, 7
  %v617 = vsub.s32 0, %v616
  %v618 = vrot.slane %v612, %v617
  %v619 = vmul.f32 %v368, %v618
  %v620 = vmul.f32 %v371, %v618
  %v621 = vmul.f32 %v376, %v618
  %v622 = vmul.f32 %v379, %v618
  %v623 = vmul.f32 %v384, %v618
  %v624 = vmul.f32 %v387, %v618
  %v625 = vmul.f32 %v392, %v618
  %v626 = vmul.f32 %v395, %v618
  %v627 = vmul.f32 %v400, %v618
  %v628 = vmul.f32 %v403, %v618
  %v629 = vmul.f32 %v408, %v618
  %v630 = vmul.f32 %v411, %v618
  %v631 = vmul.f32 %v416, %v618
  %v632 = vmul.f32 %v419, %v618
  %v633 = vmul.f32 %v424, %v618
  %v634 = vmul.f32 %v427, %v618
  %v635 = vmul.f32 %v432, %v618
  %v636 = vmul.f32 %v435, %v618
  %v637 = vmul.f32 %v440, %v618
  %v638 = vmul.f32 %v443, %v618
  %v639 = vmul.f32 %v448, %v618
  %v640 = vmul.f32 %v451, %v618
  %v641 = vmul.f32 %v456, %v618
  %v642 = vmul.f32 %v459, %v618
  %v643 = vmul.f32 %v464, %v618
  %v644 = vmul.f32 %v467, %v618
  %v645 = vmul.f32 %v472, %v618
  %v646 = vmul.f32 %v475, %v618
  %v647 = vmul.f32 %v480, %v618
  %v648 = vmul.f32 %v483, %v618
  %v649 = vmul.f32 %v488, %v618
  %v650 = vmul.f32 %v491, %v618
  %v651 = vlaneseq
  %v652 = vshrl.u32 %v651, 7
  %v653 = vsub.s32 0, %v652
  %v654 = vrot.slane %v614, %v653
  %v655 = vadd.f32 %v619, %v654
  %v656 = vadd.f32 %v620, %v654
  %v657 = vadd.f32 %v621, %v654
  %v658 = vadd.f32 %v622, %v654
  %v659 = vadd.f32 %v623, %v654
  %v660 = vadd.f32 %v624, %v654
  %v661 = vadd.f32 %v625, %v654
  %v662 = vadd.f32 %v626, %v654
  %v663 = vadd.f32 %v627, %v654
  %v664 = vadd.f32 %v628, %v654
  %v665 = vadd.f32 %v629, %v654
  %v666 = vadd.f32 %v630, %v654
  %v667 = vadd.f32 %v631, %v654
  %v668 = vadd.f32 %v632, %v654
  %v669 = vadd.f32 %v633, %v654
  %v670 = vadd.f32 %v634, %v654
  %v671 = vadd.f32 %v635, %v654
  %v672 = vadd.f32 %v636, %v654
  %v673 = vadd.f32 %v637, %v654
  %v674 = vadd.f32 %v638, %v654
  %v675 = vadd.f32 %v639, %v654
  %v676 = vadd.f32 %v640, %v654
  %v677 = vadd.f32 %v641, %v654
  %v678 = vadd.f32 %v642, %v654
  %v679 = vadd.f32 %v643, %v654
  %v680 = vadd.f32 %v644, %v654
  %v681 = vadd.f32 %v645, %v654
  %v682 = vadd.f32 %v646, %v654
  %v683 = vadd.f32 %v647, %v654
  %v684 = vadd.f32 %v648, %v654
  %v685 = vadd.f32 %v649, %v654
  %v686 = vadd.f32 %v650, %v654
  %vm687 = vcmp.ge.f32.partialorder %v655, 0.0
  %vm688 = vcmp.ge.f32.partialorder %v656, 0.0
  %vm689 = vcmp.ge.f32.partialorder %v657, 0.0
  %vm690 = vcmp.ge.f32.partialorder %v658, 0.0
  %vm691 = vcmp.ge.f32.partialorder %v659, 0.0
  %vm692 = vcmp.ge.f32.partialorder %v660, 0.0
  %vm693 = vcmp.ge.f32.partialorder %v661, 0.0
  %vm694 = vcmp.ge.f32.partialorder %v662, 0.0
  %vm695 = vcmp.ge.f32.partialorder %v663, 0.0
  %vm696 = vcmp.ge.f32.partialorder %v664, 0.0
  %vm697 = vcmp.ge.f32.partialorder %v665, 0.0
  %vm698 = vcmp.ge.f32.partialorder %v666, 0.0
  %vm699 = vcmp.ge.f32.partialorder %v667, 0.0
  %vm700 = vcmp.ge.f32.partialorder %v668, 0.0
  %vm701 = vcmp.ge.f32.partialorder %v669, 0.0
  %vm702 = vcmp.ge.f32.partialorder %v670, 0.0
  %vm703 = vcmp.ge.f32.partialorder %v671, 0.0
  %vm704 = vcmp.ge.f32.partialorder %v672, 0.0
  %vm705 = vcmp.ge.f32.partialorder %v673, 0.0
  %vm706 = vcmp.ge.f32.partialorder %v674, 0.0
  %vm707 = vcmp.ge.f32.partialorder %v675, 0.0
  %vm708 = vcmp.ge.f32.partialorder %v676, 0.0
  %vm709 = vcmp.ge.f32.partialorder %v677, 0.0
  %vm710 = vcmp.ge.f32.partialorder %v678, 0.0
  %vm711 = vcmp.ge.f32.partialorder %v679, 0.0
  %vm712 = vcmp.ge.f32.partialorder %v680, 0.0
  %vm713 = vcmp.ge.f32.partialorder %v681, 0.0
  %vm714 = vcmp.ge.f32.partialorder %v682, 0.0
  %vm715 = vcmp.ge.f32.partialorder %v683, 0.0
  %vm716 = vcmp.ge.f32.partialorder %v684, 0.0
  %vm717 = vcmp.ge.f32.partialorder %v685, 0.0
  %vm718 = vcmp.ge.f32.partialorder %v686, 0.0
  %v719 = vmul.f32 %v655, 0.01
  %v720 = vmul.f32 %v656, 0.01
  %v721 = vmul.f32 %v657, 0.01
  %v722 = vmul.f32 %v658, 0.01
  %v723 = vmul.f32 %v659, 0.01
  %v724 = vmul.f32 %v660, 0.01
  %v725 = vmul.f32 %v661, 0.01
  %v726 = vmul.f32 %v662, 0.01
  %v727 = vmul.f32 %v663, 0.01
  %v728 = vmul.f32 %v664, 0.01
  %v729 = vmul.f32 %v665, 0.01
  %v730 = vmul.f32 %v666, 0.01
  %v731 = vmul.f32 %v667, 0.01
  %v732 = vmul.f32 %v668, 0.01
  %v733 = vmul.f32 %v669, 0.01
  %v734 = vmul.f32 %v670, 0.01
  %v735 = vmul.f32 %v671, 0.01
  %v736 = vmul.f32 %v672, 0.01
  %v737 = vmul.f32 %v673, 0.01
  %v738 = vmul.f32 %v674, 0.01
  %v739 = vmul.f32 %v675, 0.01
  %v740 = vmul.f32 %v676, 0.01
  %v741 = vmul.f32 %v677, 0.01
  %v742 = vmul.f32 %v678, 0.01
  %v743 = vmul.f32 %v679, 0.01
  %v744 = vmul.f32 %v680, 0.01
  %v745 = vmul.f32 %v681, 0.01
  %v746 = vmul.f32 %v682, 0.01
  %v747 = vmul.f32 %v683, 0.01
  %v748 = vmul.f32 %v684, 0.01
  %v749 = vmul.f32 %v685, 0.01
  %v750 = vmul.f32 %v686, 0.01
  %v751 = vsel %vm687, %v655, %v719
  %v752 = vsel %vm688, %v656, %v720
  %v753 = vsel %vm689, %v657, %v721
  %v754 = vsel %vm690, %v658, %v722
  %v755 = vsel %vm691, %v659, %v723
  %v756 = vsel %vm692, %v660, %v724
  %v757 = vsel %vm693, %v661, %v725
  %v758 = vsel %vm694, %v662, %v726
  %v759 = vsel %vm695, %v663, %v727
  %v760 = vsel %vm696, %v664, %v728
  %v761 = vsel %vm697, %v665, %v729
  %v762 = vsel %vm698, %v666, %v730
  %v763 = vsel %vm699, %v667, %v731
  %v764 = vsel %vm700, %v668, %v732
  %v765 = vsel %vm701, %v669, %v733
  %v766 = vsel %vm702, %v670, %v734
  %v767 = vsel %vm703, %v671, %v735
  %v768 = vsel %vm704, %v672, %v736
  %v769 = vsel %vm705, %v673, %v737
  %v770 = vsel %vm706, %v674, %v738
  %v771 = vsel %vm707, %v675, %v739
  %v772 = vsel %vm708, %v676, %v740
  %v773 = vsel %vm709, %v677, %v741
  %v774 = vsel %vm710, %v678, %v742
  %v775 = vsel %vm711, %v679, %v743
  %v776 = vsel %vm712, %v680, %v744
  %v777 = vsel %vm713, %v681, %v745
  %v778 = vsel %vm714, %v682, %v746
  %v779 = vsel %vm715, %v683, %v747
  %v780 = vsel %vm716, %v684, %v748
  %v781 = vsel %vm717, %v685, %v749
  %v782 = vsel %vm718, %v686, %v750
  %v783 = vpack.c.bf16 %v752, %v751
  %v784 = vpack.c.bf16 %v754, %v753
  %v785 = vpack.c.bf16 %v756, %v755
  %v786 = vpack.c.bf16 %v758, %v757
  %v787 = vpack.c.bf16 %v760, %v759
  %v788 = vpack.c.bf16 %v762, %v761
  %v789 = vpack.c.bf16 %v764, %v763
  %v790 = vpack.c.bf16 %v766, %v765
  %v791 = vpack.c.bf16 %v768, %v767
  %v792 = vpack.c.bf16 %v770, %v769
  %v793 = vpack.c.bf16 %v772, %v771
  %v794 = vpack.c.bf16 %v774, %v773
  %v795 = vpack.c.bf16 %v776, %v775
  %v796 = vpack.c.bf16 %v778, %v777
  %v797 = vpack.c.bf16 %v780, %v779
  %v798 = vpack.c.bf16 %v782, %v781
  %v799 = vld [vmem:[%s5] sm:$0xf]
  %v800 = vld [vmem:[%s5 + $0x4] sm:$0xf]
  %v801 = vld [vmem:[%s5 + $0x8] sm:$0xf]
  %v802 = vld [vmem:[%s5 + $0xc] sm:$0xf]
  %v803 = vld [vmem:[%s5 + $0x10] sm:$0xf]
  %v804 = vld [vmem:[%s5 + $0x14] sm:$0xf]
  %v805 = vld [vmem:[%s5 + $0x18] sm:$0xf]
  %v806 = vld [vmem:[%s5 + $0x1c] sm:$0xf]
  %v807 = vld [vmem:[%s5 + $0x20] sm:$0xf]
  %v808 = vld [vmem:[%s5 + $0x24] sm:$0xf]
  %v809 = vld [vmem:[%s5 + $0x28] sm:$0xf]
  %v810 = vld [vmem:[%s5 + $0x2c] sm:$0xf]
  %v811 = vld [vmem:[%s5 + $0x30] sm:$0xf]
  %v812 = vld [vmem:[%s5 + $0x34] sm:$0xf]
  %v813 = vld [vmem:[%s5 + $0x38] sm:$0xf]
  %v814 = vld [vmem:[%s5 + $0x3c] sm:$0xf]
  %v815 = vld [vmem:[%s6] sm:$0x1]
  %v817 = vlaneseq
  %v818 = vshrl.u32 %v817, 7
  %v819 = vsub.s32 0, %v818
  %v820 = vrot.slane %v815, %v819
  %v838 = vunpack.c.l.b16 %v799
  %v839 = vunpack.c.l.b16 %v800
  %v840 = vunpack.c.l.b16 %v801
  %v841 = vunpack.c.l.b16 %v802
  %v842 = vunpack.c.l.b16 %v803
  %v843 = vunpack.c.l.b16 %v804
  %v844 = vunpack.c.l.b16 %v805
  %v845 = vunpack.c.l.b16 %v806
  %v846 = vunpack.c.l.b16 %v807
  %v847 = vunpack.c.l.b16 %v808
  %v848 = vunpack.c.l.b16 %v809
  %v849 = vunpack.c.l.b16 %v810
  %v850 = vunpack.c.l.b16 %v811
  %v851 = vunpack.c.l.b16 %v812
  %v852 = vunpack.c.l.b16 %v813
  %v853 = vunpack.c.l.b16 %v814
  %v854 = vpack.c.b16 %v839, %v838
  %v855 = vpack.c.b16 %v841, %v840
  %v856 = vpack.c.b16 %v843, %v842
  %v857 = vpack.c.b16 %v845, %v844
  %v858 = vpack.c.b16 %v847, %v846
  %v859 = vpack.c.b16 %v849, %v848
  %v860 = vpack.c.b16 %v851, %v850
  %v861 = vpack.c.b16 %v853, %v852
  %870 = vmatprep.subr.bf16.mxu0 0
  %871 = vmatpush1.bf16.msra.mxu0 %v861
  %872 = vmatprep.subr.bf16.mxu0 0
  %873 = vmatpush1.bf16.msra.mxu0 %v860
  %874 = vmatprep.subr.bf16.mxu0 0
  %875 = vmatpush1.bf16.msra.mxu0 %v859
  %876 = vmatprep.subr.bf16.mxu0 0
  %877 = vmatpush1.bf16.msra.mxu0 %v858
  %878 = vmatprep.subr.bf16.mxu0 0
  %879 = vmatpush1.bf16.msra.mxu0 %v857
  %880 = vmatprep.subr.bf16.mxu0 0
  %881 = vmatpush1.bf16.msra.mxu0 %v856
  %882 = vmatprep.subr.bf16.mxu0 0
  %883 = vmatpush1.bf16.msra.mxu0 %v855
  %884 = vmatprep.subr.bf16.mxu0 0
  %885 = vmatpush1.bf16.msra.mxu0 %v854
  %886 = vmatprep.subr.bf16.mxu0 0
  %887 = vmatpush2.bf16.msra.mxu0 0
  %888 = vmatprep.subr.bf16.mxu0 0
  %889 = vmatpush2.bf16.msra.mxu0 0
  %890 = vmatprep.subr.bf16.mxu0 0
  %891 = vmatpush2.bf16.msra.mxu0 0
  %892 = vmatprep.subr.bf16.mxu0 0
  %893 = vmatpush2.bf16.msra.mxu0 0
  %894 = vmatprep.subr.bf16.mxu0 0
  %895 = vmatpush2.bf16.msra.mxu0 0
  %896 = vmatprep.subr.bf16.mxu0 0
  %897 = vmatpush2.bf16.msra.mxu0 0
  %898 = vmatprep.subr.bf16.mxu0 0
  %899 = vmatpush2.bf16.msra.mxu0 0
  %900 = vmatprep.subr.bf16.mxu0 0
  %901 = vmatpush2.bf16.msra.mxu0 0
  %902 = vmatprep.mubr.bf16.mxu0 0
  %903 = vmatmul.mubr.bf16.gmra.mxu0 %v783
  %v904 = vpop.f32.mrf.mxu0
  %v905 = vadd.f32 %v820, %v904
  %v906 = vpop.f32.mrf.mxu0
  %v907 = vpop.f32.mrf.mxu0
  %v908 = vadd.f32 %v820, %v907
  %v909 = vpop.f32.mrf.mxu0
  %910 = vmatprep.mubr.bf16.mxu0 0
  %911 = vmatmul.mubr.bf16.gmra.mxu0 %v784
  %v912 = vpop.f32.mrf.mxu0
  %v913 = vadd.f32 %v820, %v912
  %v914 = vpop.f32.mrf.mxu0
  %v915 = vpop.f32.mrf.mxu0
  %v916 = vadd.f32 %v820, %v915
  %v917 = vpop.f32.mrf.mxu0
  %918 = vmatprep.mubr.bf16.mxu0 0
  %919 = vmatmul.mubr.bf16.gmra.mxu0 %v785
  %v920 = vpop.f32.mrf.mxu0
  %v921 = vadd.f32 %v820, %v920
  %v922 = vpop.f32.mrf.mxu0
  %v923 = vpop.f32.mrf.mxu0
  %v924 = vadd.f32 %v820, %v923
  %v925 = vpop.f32.mrf.mxu0
  %926 = vmatprep.mubr.bf16.mxu0 0
  %927 = vmatmul.mubr.bf16.gmra.mxu0 %v786
  %v928 = vpop.f32.mrf.mxu0
  %v929 = vadd.f32 %v820, %v928
  %v930 = vpop.f32.mrf.mxu0
  %v931 = vpop.f32.mrf.mxu0
  %v932 = vadd.f32 %v820, %v931
  %v933 = vpop.f32.mrf.mxu0
  %934 = vmatprep.mubr.bf16.mxu0 0
  %935 = vmatmul.mubr.bf16.gmra.mxu0 %v787
  %v936 = vpop.f32.mrf.mxu0
  %v937 = vadd.f32 %v820, %v936
  %v938 = vpop.f32.mrf.mxu0
  %v939 = vpop.f32.mrf.mxu0
  %v940 = vadd.f32 %v820, %v939
  %v941 = vpop.f32.mrf.mxu0
  %942 = vmatprep.mubr.bf16.mxu0 0
  %943 = vmatmul.mubr.bf16.gmra.mxu0 %v788
  %v944 = vpop.f32.mrf.mxu0
  %v945 = vadd.f32 %v820, %v944
  %v946 = vpop.f32.mrf.mxu0
  %v947 = vpop.f32.mrf.mxu0
  %v948 = vadd.f32 %v820, %v947
  %v949 = vpop.f32.mrf.mxu0
  %950 = vmatprep.mubr.bf16.mxu0 0
  %951 = vmatmul.mubr.bf16.gmra.mxu0 %v789
  %v952 = vpop.f32.mrf.mxu0
  %v953 = vadd.f32 %v820, %v952
  %v954 = vpop.f32.mrf.mxu0
  %v955 = vpop.f32.mrf.mxu0
  %v956 = vadd.f32 %v820, %v955
  %v957 = vpop.f32.mrf.mxu0
  %958 = vmatprep.mubr.bf16.mxu0 0
  %959 = vmatmul.mubr.bf16.gmra.mxu0 %v790
  %v960 = vpop.f32.mrf.mxu0
  %v961 = vadd.f32 %v820, %v960
  %v962 = vpop.f32.mrf.mxu0
  %v963 = vpop.f32.mrf.mxu0
  %v964 = vadd.f32 %v820, %v963
  %v965 = vpop.f32.mrf.mxu0
  %966 = vmatprep.mubr.bf16.mxu0 0
  %967 = vmatmul.mubr.bf16.gmra.mxu0 %v791
  %v968 = vpop.f32.mrf.mxu0
  %v969 = vadd.f32 %v820, %v968
  %v970 = vpop.f32.mrf.mxu0
  %v971 = vpop.f32.mrf.mxu0
  %v972 = vadd.f32 %v820, %v971
  %v973 = vpop.f32.mrf.mxu0
  %974 = vmatprep.mubr.bf16.mxu0 0
  %975 = vmatmul.mubr.bf16.gmra.mxu0 %v792
  %v976 = vpop.f32.mrf.mxu0
  %v977 = vadd.f32 %v820, %v976
  %v978 = vpop.f32.mrf.mxu0
  %v979 = vpop.f32.mrf.mxu0
  %v980 = vadd.f32 %v820, %v979
  %v981 = vpop.f32.mrf.mxu0
  %982 = vmatprep.mubr.bf16.mxu0 0
  %983 = vmatmul.mubr.bf16.gmra.mxu0 %v793
  %v984 = vpop.f32.mrf.mxu0
  %v985 = vadd.f32 %v820, %v984
  %v986 = vpop.f32.mrf.mxu0
  %v987 = vpop.f32.mrf.mxu0
  %v988 = vadd.f32 %v820, %v987
  %v989 = vpop.f32.mrf.mxu0
  %990 = vmatprep.mubr.bf16.mxu0 0
  %991 = vmatmul.mubr.bf16.gmra.mxu0 %v794
  %v992 = vpop.f32.mrf.mxu0
  %v993 = vadd.f32 %v820, %v992
  %v994 = vpop.f32.mrf.mxu0
  %v995 = vpop.f32.mrf.mxu0
  %v996 = vadd.f32 %v820, %v995
  %v997 = vpop.f32.mrf.mxu0
  %998 = vmatprep.mubr.bf16.mxu0 0
  %999 = vmatmul.mubr.bf16.gmra.mxu0 %v795
  %v1000 = vpop.f32.mrf.mxu0
  %v1001 = vadd.f32 %v820, %v1000
  %v1002 = vpop.f32.mrf.mxu0
  %v1003 = vpop.f32.mrf.mxu0
  %v1004 = vadd.f32 %v820, %v1003
  %v1005 = vpop.f32.mrf.mxu0
  %1006 = vmatprep.mubr.bf16.mxu0 0
  %1007 = vmatmul.mubr.bf16.gmra.mxu0 %v796
  %v1008 = vpop.f32.mrf.mxu0
  %v1009 = vadd.f32 %v820, %v1008
  %v1010 = vpop.f32.mrf.mxu0
  %v1011 = vpop.f32.mrf.mxu0
  %v1012 = vadd.f32 %v820, %v1011
  %v1013 = vpop.f32.mrf.mxu0
  %1014 = vmatprep.mubr.bf16.mxu0 0
  %1015 = vmatmul.mubr.bf16.gmra.mxu0 %v797
  %v1016 = vpop.f32.mrf.mxu0
  %v1017 = vadd.f32 %v820, %v1016
  %v1018 = vpop.f32.mrf.mxu0
  %v1019 = vpop.f32.mrf.mxu0
  %v1020 = vadd.f32 %v820, %v1019
  %v1021 = vpop.f32.mrf.mxu0
  %1022 = vmatprep.mubr.bf16.mxu0 0
  %1023 = vmatmul.mubr.bf16.gmra.mxu0 %v798
  %v1024 = vpop.f32.mrf.mxu0
  %v1025 = vadd.f32 %v820, %v1024
  %v1026 = vpop.f32.mrf.mxu0
  %v1027 = vpop.f32.mrf.mxu0
  %v1028 = vadd.f32 %v820, %v1027
  %v1029 = vpop.f32.mrf.mxu0
  %1030 = vdwg.mxu0
  %1031 = vst.msk [vmem:[%s7] sm:$0xff] %vm220, %v905
  %1032 = vst.msk [vmem:[%s7 + $0x8] sm:$0xff] %vm220, %v908
  %1033 = vst.msk [vmem:[%s7 + $0x10] sm:$0xff] %vm220, %v913
  %1034 = vst.msk [vmem:[%s7 + $0x18] sm:$0xff] %vm220, %v916
  %1035 = vst.msk [vmem:[%s7 + $0x20] sm:$0xff] %vm220, %v921
  %1036 = vst.msk [vmem:[%s7 + $0x28] sm:$0xff] %vm220, %v924
  %1037 = vst.msk [vmem:[%s7 + $0x30] sm:$0xff] %vm220, %v929
  %1038 = vst.msk [vmem:[%s7 + $0x38] sm:$0xff] %vm220, %v932
  %1039 = vst.msk [vmem:[%s7 + $0x40] sm:$0xff] %vm220, %v937
  %1040 = vst.msk [vmem:[%s7 + $0x48] sm:$0xff] %vm220, %v940
  %1041 = vst.msk [vmem:[%s7 + $0x50] sm:$0xff] %vm220, %v945
  %1042 = vst.msk [vmem:[%s7 + $0x58] sm:$0xff] %vm220, %v948
  %1043 = vst.msk [vmem:[%s7 + $0x60] sm:$0xff] %vm220, %v953
  %1044 = vst.msk [vmem:[%s7 + $0x68] sm:$0xff] %vm220, %v956
  %1045 = vst.msk [vmem:[%s7 + $0x70] sm:$0xff] %vm220, %v961
  %1046 = vst.msk [vmem:[%s7 + $0x78] sm:$0xff] %vm220, %v964
  %1047 = vst.msk [vmem:[%s7 + $0x80] sm:$0xff] %vm220, %v969
  %1048 = vst.msk [vmem:[%s7 + $0x88] sm:$0xff] %vm220, %v972
  %1049 = vst.msk [vmem:[%s7 + $0x90] sm:$0xff] %vm220, %v977
  %1050 = vst.msk [vmem:[%s7 + $0x98] sm:$0xff] %vm220, %v980
  %1051 = vst.msk [vmem:[%s7 + $0xa0] sm:$0xff] %vm220, %v985
  %1052 = vst.msk [vmem:[%s7 + $0xa8] sm:$0xff] %vm220, %v988
  %1053 = vst.msk [vmem:[%s7 + $0xb0] sm:$0xff] %vm220, %v993
  %1054 = vst.msk [vmem:[%s7 + $0xb8] sm:$0xff] %vm220, %v996
  %1055 = vst.msk [vmem:[%s7 + $0xc0] sm:$0xff] %vm220, %v1001
  %1056 = vst.msk [vmem:[%s7 + $0xc8] sm:$0xff] %vm220, %v1004
  %1057 = vst.msk [vmem:[%s7 + $0xd0] sm:$0xff] %vm220, %v1009
  %1058 = vst.msk [vmem:[%s7 + $0xd8] sm:$0xff] %vm220, %v1012
  %1059 = vst.msk [vmem:[%s7 + $0xe0] sm:$0xff] %vm220, %v1017
  %1060 = vst.msk [vmem:[%s7 + $0xe8] sm:$0xff] %vm220, %v1020
  %1061 = vst.msk [vmem:[%s7 + $0xf0] sm:$0xff] %vm220, %v1025
  %1062 = vst.msk [vmem:[%s7 + $0xf8] sm:$0xff] %vm220, %v1028
  // Predicated region
  $region30: #{tpu_custom_call.1} parent=0 // pred_check
    _
  $region31: #{tpu_custom_call.1} parent=0 // pred_check_branch
    %1064 = sbr.rel (0) target = $region33
  $region32: #{tpu_custom_call.1} parent=0 // pred_region
    _
  $region33: #{tpu_custom_call.1} parent=0 // pred_fallthru
    _
  // Predicated region
  $region34: #{tpu_custom_call.1} parent=0 // pred_check
    _
  $region35: #{tpu_custom_call.1} parent=0 // pred_check_branch
    %1066 = sbr.rel (0) target = $region37
  $region36: #{tpu_custom_call.1} parent=0 // pred_region
    _
  $region37: #{tpu_custom_call.1} parent=0 // pred_fallthru
    _

</llo_original>
